<compile_context>
chip_gen: v6e
topology: v6e:2x2x1
jax: 0.10.0
libtpu: 0.0.40
codegen_flags: <defaults>
</compile_context>

<pallas_src>
import functools
import math

import jax
import jax.numpy as jnp
from jax.experimental import pallas as pl
from jax.experimental.pallas import tpu as pltpu


def _round_up(x, m):
    return ((x + m - 1) // m) * m


# --------------------------------------------------------------------------
# Fused kernel: whole MLP on one (tm, Dp) row tile.
# --------------------------------------------------------------------------
def _fused_mlp_kernel(x_ref, w_in_ref, b_in_ref, w_hid_ref, b_hid_ref,
                      w_out_ref, b_out_ref, o_ref, *,
                      num_hidden_matmuls, negative_slope):
    # ---- layer 0: (tm, Dp) @ (Dp, Hp), bf16 MXU, f32 accumulate ----
    x = x_ref[...]                                   # already bf16 (wrapper-cast)
    acc = jnp.dot(x, w_in_ref[...], preferred_element_type=jnp.float32)
    acc = acc + b_in_ref[...]                        # (1, Hp) broadcast
    acc = jnp.where(acc >= 0, acc, negative_slope * acc)

    # ---- hidden layers 1..num_layers-1 (static unroll, weights resident) ----
    for l in range(num_hidden_matmuls):
        h = acc.astype(jnp.bfloat16)
        acc = jnp.dot(h, w_hid_ref[l], preferred_element_type=jnp.float32)
        acc = acc + b_hid_ref[l]                     # (1, Hp) broadcast
        acc = jnp.where(acc >= 0, acc, negative_slope * acc)

    # ---- output layer Linear(Hp, 1) as a lane reduction ----
    w_out = w_out_ref[...].astype(jnp.float32)       # (1, Hp)
    out = jnp.sum(acc * w_out, axis=-1, keepdims=True)   # (tm, 1)
    out = out + b_out_ref[...]                       # (1, 1) broadcast
    o_ref[...] = out.astype(o_ref.dtype)


# --------------------------------------------------------------------------
# Parameter construction / packing
# --------------------------------------------------------------------------
def init_discriminator_params(key, latent_dim, hidden_units=1000, num_layers=6):
    """f32 params matching nn.Linear default init (uniform +-1/sqrt(fan_in)).

    Weights are stored (in_features, out_features) so y = x @ W + b."""
    params = []
    in_dim = latent_dim
    dims = [hidden_units] * num_layers + [1]
    for out_dim in dims:
        key, kw, kb = jax.random.split(key, 3)
        bound = 1.0 / math.sqrt(in_dim)
        w = jax.random.uniform(kw, (in_dim, out_dim), jnp.float32,
                               minval=-bound, maxval=bound)
        b = jax.random.uniform(kb, (out_dim,), jnp.float32,
                               minval=-bound, maxval=bound)
        params.append((w, b))
        in_dim = out_dim
    return params


def prepare_fused_params(params, weight_dtype=jnp.bfloat16):
    """Pad feature dims to multiples of 128, stack hidden layers, cast weights."""
    num_layers = len(params) - 1
    assert num_layers >= 2, "fused kernel expects num_layers >= 2"
    d_in = params[0][0].shape[0]
    hidden = params[0][0].shape[1]
    d_pad = _round_up(d_in, 128)
    h_pad = _round_up(hidden, 128)

    w0, b0 = params[0]
    w_in = jnp.zeros((d_pad, h_pad), jnp.float32).at[:d_in, :hidden].set(w0)
    b_in = jnp.zeros((1, h_pad), jnp.float32).at[0, :hidden].set(b0)

    w_hid = jnp.zeros((num_layers - 1, h_pad, h_pad), jnp.float32)
    b_hid = jnp.zeros((num_layers - 1, 1, h_pad), jnp.float32)
    for l, (w, b) in enumerate(params[1:num_layers]):
        w_hid = w_hid.at[l, :hidden, :hidden].set(w)
        b_hid = b_hid.at[l, 0, :hidden].set(b)

    w_last, b_last = params[-1]                      # (hidden, 1), (1,)
    w_out = jnp.zeros((1, h_pad), jnp.float32).at[0, :hidden].set(w_last[:, 0])
    b_out = jnp.asarray(b_last, jnp.float32).reshape(1, 1)

    return (w_in.astype(weight_dtype), b_in,
            w_hid.astype(weight_dtype), b_hid,
            w_out.astype(weight_dtype), b_out)


# --------------------------------------------------------------------------
# Row-tile selection
# --------------------------------------------------------------------------
def _choose_row_tiling(m, tm):
    """Return (row_tile, padded_rows).

    Small batches: a single padded tile. Large batches: an even (>=2) number
    of equal tiles so v7x's two TensorCores split the 'parallel' axis evenly,
    each tile capped at 512 rows (amortizes the ~0.35us per-grid-step
    overhead on v6e/v7x; harmless on v5e)."""
    if tm is not None:
        tm = _round_up(max(tm, 8), 8)
        return tm, _round_up(m, tm)
    if m <= 256:
        tm = _round_up(max(m, 8), 8)
        return tm, tm
    n_tiles = max(2, -(-m // 512))
    if n_tiles % 2:                     # keep the tile count even for 2 TCs
        n_tiles += 1
    tm = _round_up(-(-m // n_tiles), 8)
    return tm, n_tiles * tm


# --------------------------------------------------------------------------
# Forward pass
# --------------------------------------------------------------------------
def discriminator_forward(z, fused_params, *, negative_slope=0.2, tm=None):
    """z: (batch, latent_dim) f32 -> (batch, 1) f32 logits."""
    w_in, b_in, w_hid, b_hid, w_out, b_out = fused_params
    m, d_in = z.shape
    d_pad, h_pad = w_in.shape
    n_hid = w_hid.shape[0]

    tm, m_pad = _choose_row_tiling(m, tm)

    # Zero-pad rows (to tile multiple) and lanes (to d_pad), directly in bf16.
    x = jnp.zeros((m_pad, d_pad), jnp.bfloat16).at[:m, :d_in].set(
        z.astype(jnp.bfloat16))

    # Constant-index blocks: single-buffered (no useless second VMEM copy).
    resident = pl.Buffered(1)

    # VMEM budget: resident weights + pipeline/accumulator headroom.
    weight_bytes = (int(w_in.size + w_hid.size + w_out.size) * 2
                    + int(b_in.size + b_hid.size + b_out.size) * 4)
    vmem_limit = max(32 * 1024 * 1024, weight_bytes + 20 * 1024 * 1024)

    kernel = functools.partial(
        _fused_mlp_kernel,
        num_hidden_matmuls=n_hid,
        negative_slope=negative_slope,
    )
    out = pl.pallas_call(
        kernel,
        out_shape=jax.ShapeDtypeStruct((m_pad, 1), jnp.float32),
        grid_spec=pltpu.PrefetchScalarGridSpec(
            num_scalar_prefetch=0,
            grid=(m_pad // tm,),
            in_specs=[
                # activation tile: varies per grid step -> default pipelining
                pl.BlockSpec((tm, d_pad), lambda i: (i, 0)),
                # resident weights/biases: constant block index, single buffer
                pl.BlockSpec((d_pad, h_pad), lambda i: (0, 0),
                             pipeline_mode=resident),                       # W0
                pl.BlockSpec((1, h_pad), lambda i: (0, 0),
                             pipeline_mode=resident),                       # b0
                pl.BlockSpec((n_hid, h_pad, h_pad), lambda i: (0, 0, 0),
                             pipeline_mode=resident),                       # W1..L-1
                pl.BlockSpec((n_hid, 1, h_pad), lambda i: (0, 0, 0),
                             pipeline_mode=resident),                       # b1..L-1
                pl.BlockSpec((1, h_pad), lambda i: (0, 0),
                             pipeline_mode=resident),                       # W_out row
                pl.BlockSpec((1, 1), lambda i: (0, 0),
                             pipeline_mode=resident),                       # b_out
            ],
            # (tm, 1) output is only tm*4 bytes per several us of MXU work;
            # lane-dense widening not worth it here (per review).
            out_specs=pl.BlockSpec((tm, 1), lambda i: (i, 0)),
        ),
        compiler_params=pltpu.CompilerParams(
            dimension_semantics=("parallel",),
            vmem_limit_bytes=int(vmem_limit),
        ),
    )(x, w_in, b_in, w_hid, b_hid, w_out, b_out)
    return out[:m]


# --------------------------------------------------------------------------
# References
# --------------------------------------------------------------------------
def reference_forward_f32(z, params, negative_slope=0.2):
    """PyTorch-equivalent full-f32 forward (unpadded params)."""
    h = z
    for w, b in params[:-1]:
        h = h @ w + b
        h = jnp.where(h >= 0, h, negative_slope * h)
    w_out, b_out = params[-1]
    return h @ w_out + b_out


def reference_forward_fused_math(z, fused_params, negative_slope=0.2):
    """Plain-jnp replica of the kernel's bf16-weight / f32-accumulate math."""
    w_in, b_in, w_hid, b_hid, w_out, b_out = fused_params
    d_in = z.shape[1]
    d_pad = w_in.shape[0]
    x = jnp.zeros((z.shape[0], d_pad), jnp.bfloat16).at[:, :d_in].set(
        z.astype(jnp.bfloat16))
    acc = jnp.dot(x, w_in, preferred_element_type=jnp.float32)
    acc = acc + b_in
    acc = jnp.where(acc >= 0, acc, negative_slope * acc)
    for l in range(w_hid.shape[0]):
        acc = jnp.dot(acc.astype(jnp.bfloat16), w_hid[l],
                      preferred_element_type=jnp.float32)
        acc = acc + b_hid[l]
        acc = jnp.where(acc >= 0, acc, negative_slope * acc)
    out = jnp.sum(acc * w_out.astype(jnp.float32), axis=-1, keepdims=True)
    return out + b_out[0, 0]


if __name__ == "__main__":
    key = jax.random.PRNGKey(0)
    k_params, k_z = jax.random.split(key)

    batch = 8
    latent_dim = 8
    hidden_units = 32      # small demo (padded to 128 lanes inside the wrapper)
    num_layers = 6

    params = init_discriminator_params(
        k_params, latent_dim, hidden_units=hidden_units, num_layers=num_layers
    )
    fused = prepare_fused_params(params)
    z = jax.random.normal(k_z, (batch, latent_dim), jnp.float32)

    out = discriminator_forward(z, fused)
    out = jax.block_until_ready(out)
    assert out.shape == (batch, 1), out.shape

    # Tight check against a jnp replica of the kernel's exact arithmetic.
    ref_bf16 = reference_forward_fused_math(z, fused)
    assert jnp.allclose(out, ref_bf16, atol=2e-3, rtol=2e-3), (
        float(jnp.max(jnp.abs(out - ref_bf16)))
    )

    # Sanity check against the full-f32 PyTorch-equivalent forward
    # (difference comes only from bf16 weight/activation storage).
    ref_f32 = reference_forward_f32(z, params)
    assert jnp.allclose(out, ref_f32, atol=1e-1, rtol=1e-1), (
        float(jnp.max(jnp.abs(out - ref_f32)))
    )

    print("KERNEL_OK")
</pallas_src>

<mosaic_0001>
module attributes {stable_mosaic.version = 11 : i64} {
  func.func @_fused_mlp_kernel(%arg0: i32, %arg1: memref<8x128xbf16, #tpu.memory_space<vmem>>, %arg2: memref<128x128xbf16, #tpu.memory_space<vmem>>, %arg3: memref<1x128xf32, #tpu.memory_space<vmem>>, %arg4: memref<5x128x128xbf16, #tpu.memory_space<vmem>>, %arg5: memref<5x1x128xf32, #tpu.memory_space<vmem>>, %arg6: memref<1x128xbf16, #tpu.memory_space<vmem>>, %arg7: memref<1x1xf32, #tpu.memory_space<vmem>>, %arg8: memref<8x1xf32, #tpu.memory_space<vmem>>) attributes {dimension_semantics = [#tpu.dimension_semantics<parallel>], iteration_bounds = array<i64: 1>, scalar_prefetch = 0 : i64, scratch_operands = 0 : i64, tpu.core_type = #tpu.core_type<tc>, window_params = [{transform_indices = @transform_0, window_bounds = array<i64: 8, 128>}, {pipeline_mode = #tpu.pipeline_mode<synchronous>, transform_indices = @transform_1, window_bounds = array<i64: 128, 128>}, {pipeline_mode = #tpu.pipeline_mode<synchronous>, transform_indices = @transform_2, window_bounds = array<i64: 1, 128>}, {pipeline_mode = #tpu.pipeline_mode<synchronous>, transform_indices = @transform_3, window_bounds = array<i64: 5, 128, 128>}, {pipeline_mode = #tpu.pipeline_mode<synchronous>, transform_indices = @transform_4, window_bounds = array<i64: 5, 1, 128>}, {pipeline_mode = #tpu.pipeline_mode<synchronous>, transform_indices = @transform_5, window_bounds = array<i64: 1, 128>}, {pipeline_mode = #tpu.pipeline_mode<synchronous>, transform_indices = @transform_6, window_bounds = array<i64: 1, 1>}, {transform_indices = @transform_7, window_bounds = array<i64: 8, 1>}]} {
    %c0 = arith.constant 0 : index
    %c0_0 = arith.constant 0 : index
    %0 = vector.load %arg1[%c0, %c0_0] : memref<8x128xbf16, #tpu.memory_space<vmem>>, vector<8x128xbf16>
    %c0_1 = arith.constant 0 : index
    %c0_2 = arith.constant 0 : index
    %1 = vector.load %arg2[%c0_1, %c0_2] : memref<128x128xbf16, #tpu.memory_space<vmem>>, vector<128x128xbf16>
    %cst = arith.constant dense<0.000000e+00> : vector<8x128xf32>
    %2 = tpu.matmul %0, %1, %cst {dimension_numbers = #tpu.dot_dimension_numbers<[1], [0], [0], [1], [0, 0, 1, 1], [], []>} : vector<8x128xbf16>, vector<128x128xbf16>, vector<8x128xf32> -> vector<8x128xf32>
    %c0_3 = arith.constant 0 : index
    %c0_4 = arith.constant 0 : index
    %3 = vector.load %arg3[%c0_3, %c0_4] : memref<1x128xf32, #tpu.memory_space<vmem>>, vector<1x128xf32>
    %4 = vector.broadcast %3 : vector<1x128xf32> to vector<8x128xf32>
    %5 = arith.addf %2, %4 : vector<8x128xf32>
    %cst_5 = arith.constant 0.000000e+00 : f32
    %6 = vector.broadcast %cst_5 : f32 to vector<8x128xf32>
    %7 = arith.cmpf oge, %5, %6 : vector<8x128xf32>
    %cst_6 = arith.constant 2.000000e-01 : f32
    %8 = vector.broadcast %cst_6 : f32 to vector<8x128xf32>
    %9 = arith.mulf %8, %5 : vector<8x128xf32>
    %10 = arith.select %7, %5, %9 : vector<8x128xi1>, vector<8x128xf32>
    %11 = arith.truncf %10 : vector<8x128xf32> to vector<8x128xbf16>
    %c0_7 = arith.constant 0 : index
    %c0_8 = arith.constant 0 : index
    %c0_9 = arith.constant 0 : index
    %12 = vector.load %arg4[%c0_7, %c0_8, %c0_9] : memref<5x128x128xbf16, #tpu.memory_space<vmem>>, vector<1x128x128xbf16>
    %13 = vector.shape_cast %12 : vector<1x128x128xbf16> to vector<128x128xbf16>
    %cst_10 = arith.constant dense<0.000000e+00> : vector<8x128xf32>
    %14 = tpu.matmul %11, %13, %cst_10 {dimension_numbers = #tpu.dot_dimension_numbers<[1], [0], [0], [1], [0, 0, 1, 1], [], []>} : vector<8x128xbf16>, vector<128x128xbf16>, vector<8x128xf32> -> vector<8x128xf32>
    %c0_11 = arith.constant 0 : index
    %c0_12 = arith.constant 0 : index
    %c0_13 = arith.constant 0 : index
    %15 = vector.load %arg5[%c0_11, %c0_12, %c0_13] : memref<5x1x128xf32, #tpu.memory_space<vmem>>, vector<1x1x128xf32>
    %16 = vector.shape_cast %15 : vector<1x1x128xf32> to vector<1x128xf32>
    %17 = vector.broadcast %16 : vector<1x128xf32> to vector<8x128xf32>
    %18 = arith.addf %14, %17 : vector<8x128xf32>
    %cst_14 = arith.constant 0.000000e+00 : f32
    %19 = vector.broadcast %cst_14 : f32 to vector<8x128xf32>
    %20 = arith.cmpf oge, %18, %19 : vector<8x128xf32>
    %cst_15 = arith.constant 2.000000e-01 : f32
    %21 = vector.broadcast %cst_15 : f32 to vector<8x128xf32>
    %22 = arith.mulf %21, %18 : vector<8x128xf32>
    %23 = arith.select %20, %18, %22 : vector<8x128xi1>, vector<8x128xf32>
    %24 = arith.truncf %23 : vector<8x128xf32> to vector<8x128xbf16>
    %c1 = arith.constant 1 : index
    %c0_16 = arith.constant 0 : index
    %c0_17 = arith.constant 0 : index
    %25 = vector.load %arg4[%c1, %c0_16, %c0_17] : memref<5x128x128xbf16, #tpu.memory_space<vmem>>, vector<1x128x128xbf16>
    %26 = vector.shape_cast %25 : vector<1x128x128xbf16> to vector<128x128xbf16>
    %cst_18 = arith.constant dense<0.000000e+00> : vector<8x128xf32>
    %27 = tpu.matmul %24, %26, %cst_18 {dimension_numbers = #tpu.dot_dimension_numbers<[1], [0], [0], [1], [0, 0, 1, 1], [], []>} : vector<8x128xbf16>, vector<128x128xbf16>, vector<8x128xf32> -> vector<8x128xf32>
    %c1_19 = arith.constant 1 : index
    %c0_20 = arith.constant 0 : index
    %c0_21 = arith.constant 0 : index
    %28 = vector.load %arg5[%c1_19, %c0_20, %c0_21] : memref<5x1x128xf32, #tpu.memory_space<vmem>>, vector<1x1x128xf32>
    %29 = vector.shape_cast %28 : vector<1x1x128xf32> to vector<1x128xf32>
    %30 = vector.broadcast %29 : vector<1x128xf32> to vector<8x128xf32>
    %31 = arith.addf %27, %30 : vector<8x128xf32>
    %cst_22 = arith.constant 0.000000e+00 : f32
    %32 = vector.broadcast %cst_22 : f32 to vector<8x128xf32>
    %33 = arith.cmpf oge, %31, %32 : vector<8x128xf32>
    %cst_23 = arith.constant 2.000000e-01 : f32
    %34 = vector.broadcast %cst_23 : f32 to vector<8x128xf32>
    %35 = arith.mulf %34, %31 : vector<8x128xf32>
    %36 = arith.select %33, %31, %35 : vector<8x128xi1>, vector<8x128xf32>
    %37 = arith.truncf %36 : vector<8x128xf32> to vector<8x128xbf16>
    %c2 = arith.constant 2 : index
    %c0_24 = arith.constant 0 : index
    %c0_25 = arith.constant 0 : index
    %38 = vector.load %arg4[%c2, %c0_24, %c0_25] : memref<5x128x128xbf16, #tpu.memory_space<vmem>>, vector<1x128x128xbf16>
    %39 = vector.shape_cast %38 : vector<1x128x128xbf16> to vector<128x128xbf16>
    %cst_26 = arith.constant dense<0.000000e+00> : vector<8x128xf32>
    %40 = tpu.matmul %37, %39, %cst_26 {dimension_numbers = #tpu.dot_dimension_numbers<[1], [0], [0], [1], [0, 0, 1, 1], [], []>} : vector<8x128xbf16>, vector<128x128xbf16>, vector<8x128xf32> -> vector<8x128xf32>
    %c2_27 = arith.constant 2 : index
    %c0_28 = arith.constant 0 : index
    %c0_29 = arith.constant 0 : index
    %41 = vector.load %arg5[%c2_27, %c0_28, %c0_29] : memref<5x1x128xf32, #tpu.memory_space<vmem>>, vector<1x1x128xf32>
    %42 = vector.shape_cast %41 : vector<1x1x128xf32> to vector<1x128xf32>
    %43 = vector.broadcast %42 : vector<1x128xf32> to vector<8x128xf32>
    %44 = arith.addf %40, %43 : vector<8x128xf32>
    %cst_30 = arith.constant 0.000000e+00 : f32
    %45 = vector.broadcast %cst_30 : f32 to vector<8x128xf32>
    %46 = arith.cmpf oge, %44, %45 : vector<8x128xf32>
    %cst_31 = arith.constant 2.000000e-01 : f32
    %47 = vector.broadcast %cst_31 : f32 to vector<8x128xf32>
    %48 = arith.mulf %47, %44 : vector<8x128xf32>
    %49 = arith.select %46, %44, %48 : vector<8x128xi1>, vector<8x128xf32>
    %50 = arith.truncf %49 : vector<8x128xf32> to vector<8x128xbf16>
    %c3 = arith.constant 3 : index
    %c0_32 = arith.constant 0 : index
    %c0_33 = arith.constant 0 : index
    %51 = vector.load %arg4[%c3, %c0_32, %c0_33] : memref<5x128x128xbf16, #tpu.memory_space<vmem>>, vector<1x128x128xbf16>
    %52 = vector.shape_cast %51 : vector<1x128x128xbf16> to vector<128x128xbf16>
    %cst_34 = arith.constant dense<0.000000e+00> : vector<8x128xf32>
    %53 = tpu.matmul %50, %52, %cst_34 {dimension_numbers = #tpu.dot_dimension_numbers<[1], [0], [0], [1], [0, 0, 1, 1], [], []>} : vector<8x128xbf16>, vector<128x128xbf16>, vector<8x128xf32> -> vector<8x128xf32>
    %c3_35 = arith.constant 3 : index
    %c0_36 = arith.constant 0 : index
    %c0_37 = arith.constant 0 : index
    %54 = vector.load %arg5[%c3_35, %c0_36, %c0_37] : memref<5x1x128xf32, #tpu.memory_space<vmem>>, vector<1x1x128xf32>
    %55 = vector.shape_cast %54 : vector<1x1x128xf32> to vector<1x128xf32>
    %56 = vector.broadcast %55 : vector<1x128xf32> to vector<8x128xf32>
    %57 = arith.addf %53, %56 : vector<8x128xf32>
    %cst_38 = arith.constant 0.000000e+00 : f32
    %58 = vector.broadcast %cst_38 : f32 to vector<8x128xf32>
    %59 = arith.cmpf oge, %57, %58 : vector<8x128xf32>
    %cst_39 = arith.constant 2.000000e-01 : f32
    %60 = vector.broadcast %cst_39 : f32 to vector<8x128xf32>
    %61 = arith.mulf %60, %57 : vector<8x128xf32>
    %62 = arith.select %59, %57, %61 : vector<8x128xi1>, vector<8x128xf32>
    %63 = arith.truncf %62 : vector<8x128xf32> to vector<8x128xbf16>
    %c4 = arith.constant 4 : index
    %c0_40 = arith.constant 0 : index
    %c0_41 = arith.constant 0 : index
    %64 = vector.load %arg4[%c4, %c0_40, %c0_41] : memref<5x128x128xbf16, #tpu.memory_space<vmem>>, vector<1x128x128xbf16>
    %65 = vector.shape_cast %64 : vector<1x128x128xbf16> to vector<128x128xbf16>
    %cst_42 = arith.constant dense<0.000000e+00> : vector<8x128xf32>
    %66 = tpu.matmul %63, %65, %cst_42 {dimension_numbers = #tpu.dot_dimension_numbers<[1], [0], [0], [1], [0, 0, 1, 1], [], []>} : vector<8x128xbf16>, vector<128x128xbf16>, vector<8x128xf32> -> vector<8x128xf32>
    %c4_43 = arith.constant 4 : index
    %c0_44 = arith.constant 0 : index
    %c0_45 = arith.constant 0 : index
    %67 = vector.load %arg5[%c4_43, %c0_44, %c0_45] : memref<5x1x128xf32, #tpu.memory_space<vmem>>, vector<1x1x128xf32>
    %68 = vector.shape_cast %67 : vector<1x1x128xf32> to vector<1x128xf32>
    %69 = vector.broadcast %68 : vector<1x128xf32> to vector<8x128xf32>
    %70 = arith.addf %66, %69 : vector<8x128xf32>
    %cst_46 = arith.constant 0.000000e+00 : f32
    %71 = vector.broadcast %cst_46 : f32 to vector<8x128xf32>
    %72 = arith.cmpf oge, %70, %71 : vector<8x128xf32>
    %cst_47 = arith.constant 2.000000e-01 : f32
    %73 = vector.broadcast %cst_47 : f32 to vector<8x128xf32>
    %74 = arith.mulf %73, %70 : vector<8x128xf32>
    %75 = arith.select %72, %70, %74 : vector<8x128xi1>, vector<8x128xf32>
    %c0_48 = arith.constant 0 : index
    %c0_49 = arith.constant 0 : index
    %76 = vector.load %arg6[%c0_48, %c0_49] : memref<1x128xbf16, #tpu.memory_space<vmem>>, vector<1x128xbf16>
    %77 = arith.extf %76 : vector<1x128xbf16> to vector<1x128xf32>
    %78 = vector.broadcast %77 : vector<1x128xf32> to vector<8x128xf32>
    %79 = arith.mulf %75, %78 : vector<8x128xf32>
    %cst_50 = arith.constant dense<0.000000e+00> : vector<8xf32>
    %80 = vector.multi_reduction <add>, %79, %cst_50 [1] : vector<8x128xf32> to vector<8xf32>
    %81 = vector.shape_cast %80 : vector<8xf32> to vector<8x1xf32>
    %c0_51 = arith.constant 0 : index
    %c0_52 = arith.constant 0 : index
    %82 = vector.load %arg7[%c0_51, %c0_52] : memref<1x1xf32, #tpu.memory_space<vmem>>, vector<1x1xf32>
    %83 = vector.broadcast %82 : vector<1x1xf32> to vector<8x1xf32>
    %84 = arith.addf %81, %83 : vector<8x1xf32>
    %c0_53 = arith.constant 0 : index
    %c0_54 = arith.constant 0 : index
    %85 = vector.load %arg8[%c0_53, %c0_54] : memref<8x1xf32, #tpu.memory_space<vmem>>, vector<8x1xf32>
    tpu.vector_store %arg8[%c0_53, %c0_54], %84 {strides = array<i32>} : memref<8x1xf32, #tpu.memory_space<vmem>>, vector<8x1xf32>,
    return
  }
  func.func @transform_0(%arg0: i32) -> (i32, i32) {
    %c0_i32 = arith.constant 0 : i32
    %c0_i32_0 = arith.constant 0 : i32
    return %arg0, %c0_i32 : i32, i32
  }
  func.func @transform_1(%arg0: i32) -> (i32, i32) {
    %c0_i32 = arith.constant 0 : i32
    %c0_i32_0 = arith.constant 0 : i32
    %c0_i32_1 = arith.constant 0 : i32
    return %c0_i32, %c0_i32_0 : i32, i32
  }
  func.func @transform_2(%arg0: i32) -> (i32, i32) {
    %c0_i32 = arith.constant 0 : i32
    %c0_i32_0 = arith.constant 0 : i32
    %c0_i32_1 = arith.constant 0 : i32
    return %c0_i32, %c0_i32_0 : i32, i32
  }
  func.func @transform_3(%arg0: i32) -> (i32, i32, i32) {
    %c0_i32 = arith.constant 0 : i32
    %c0_i32_0 = arith.constant 0 : i32
    %c0_i32_1 = arith.constant 0 : i32
    %c0_i32_2 = arith.constant 0 : i32
    return %c0_i32, %c0_i32_0, %c0_i32_1 : i32, i32, i32
  }
  func.func @transform_4(%arg0: i32) -> (i32, i32, i32) {
    %c0_i32 = arith.constant 0 : i32
    %c0_i32_0 = arith.constant 0 : i32
    %c0_i32_1 = arith.constant 0 : i32
    %c0_i32_2 = arith.constant 0 : i32
    return %c0_i32, %c0_i32_0, %c0_i32_1 : i32, i32, i32
  }
  func.func @transform_5(%arg0: i32) -> (i32, i32) {
    %c0_i32 = arith.constant 0 : i32
    %c0_i32_0 = arith.constant 0 : i32
    %c0_i32_1 = arith.constant 0 : i32
    return %c0_i32, %c0_i32_0 : i32, i32
  }
  func.func @transform_6(%arg0: i32) -> (i32, i32) {
    %c0_i32 = arith.constant 0 : i32
    %c0_i32_0 = arith.constant 0 : i32
    %c0_i32_1 = arith.constant 0 : i32
    return %c0_i32, %c0_i32_0 : i32, i32
  }
  func.func @transform_7(%arg0: i32) -> (i32, i32) {
    %c0_i32 = arith.constant 0 : i32
    %c0_i32_0 = arith.constant 0 : i32
    return %arg0, %c0_i32 : i32, i32
  }
}

</mosaic_0001>

<llo_original>
// kernel: tpu_custom_call.1
$region0: #{tpu_custom_call.1}
  #allocation0 [shape = 'u32[]', space=smem, size = 0x4, offset = 0x4, fixed_abs, tag = 'smem constant byte address 0x4 - core index']
  #allocation1 [shape = 'u32[144,128]{1,0:T(1,128)}', space=vmem, size = 0x12000, scoped, tag = 'internal scratch']
  #allocation2 [shape = 'f32[1,1]{1,0:T(1,128)S(1)}', space=vmem, size = 0x200, scoped, tag = 'scoped memory for tpu_custom_call.1']
  %s0 = inlined_call_operand.hbm [shape: bf16[8,128], index: 0, kind: input, shape index: {}]
  %s1 = inlined_call_operand.hbm [shape: bf16[128,128], index: 1, kind: input, shape index: {}]
  %s2 = inlined_call_operand.vmem [shape: f32[1,128], index: 2, kind: input, shape index: {}]
  %s3 = inlined_call_operand.hbm [shape: bf16[5,128,128], index: 3, kind: input, shape index: {}]
  %s4 = inlined_call_operand.vmem [shape: f32[5,1,128], index: 4, kind: input, shape index: {}]
  %s5 = inlined_call_operand.vmem [shape: bf16[1,128], index: 5, kind: input, shape index: {}]
  %s6 = inlined_call_operand.<no memory space> [shape: f32[1,1], index: 6, kind: input, shape index: {}]
  %s7 = inlined_call_operand.vmem [shape: f32[8,1], index: 7, kind: output, shape index: {}]
  %s8 = sld [smem:[#allocation0]]
  $region50: #{tpu_custom_call.1} parent=0
    _
  %s10 = ssub.s32 1, %s8
  %s11 = scalar_select 0, %s10, %s8
  %v12 = vstv %s6
  %13 = vst [vmem:[#allocation2] sm:$0x1] %v12
  $region1: #{tpu_custom_call.1} parent=0
    #allocation3 [shape = 'u8[2048]{0}', space=vmem, size = 0x800, scoped, tag = 'input window, operand 0, single buffered']
    #allocation4 [shape = 's32[1]{0}', space=sflag, size = 0x4, scoped, tag = 'scoped memory for tpu_custom_call.1']
    #allocation5 [shape = 'u8[32768]{0}', space=vmem, size = 0x8000, scoped, tag = 'input window, operand 1, single buffered']
    #allocation6 [shape = 's32[1]{0}', space=sflag, size = 0x4, scoped, tag = 'scoped memory for tpu_custom_call.1']
    #allocation7 [shape = 'u8[163840]{0}', space=vmem, size = 0x28000, scoped, tag = 'input window, operand 3, single buffered']
    %14 = vsyncpa [#allocation4], 0
    %15 = vsyncpa [#allocation6], 0
    // Predicated region
    $region2: #{tpu_custom_call.1} parent=1 // pred_check
      _
    $region3: #{tpu_custom_call.1} parent=1 // pred_check_branch
      %17 = sbr.rel (0) target = $region5
    $region4: #{tpu_custom_call.1} parent=1 // pred_region
      %s19 = ssub.s32 64, 64
      %20 = vsyncadd [#allocation4], %s19
      %s22 = sshll.u32 [#allocation3], 4
      %s23 = int_to_ptr.vmem [resolvable:$true] %s22
      %25 = dma.hbm_to_vmem [thread:$0]  %s0, 64, %s23, [#allocation4]
    $region5: #{tpu_custom_call.1} parent=1 // pred_fallthru
      _
    // Predicated region
    $region6: #{tpu_custom_call.1} parent=1 // pred_check
      _
    $region7: #{tpu_custom_call.1} parent=1 // pred_check_branch
      %27 = sbr.rel (0) target = $region9
    $region8: #{tpu_custom_call.1} parent=1 // pred_region
      %s29 = ssub.s32 1024, 1024
      %30 = vsyncadd [#allocation6], %s29
      %s31 = sshll.u32 [#allocation5], 4
      %s32 = int_to_ptr.vmem [resolvable:$true] %s31
      %37 = dma.hbm_to_vmem [thread:$0]  %s1, 1024, %s32, [#allocation6], 64, 64, 4
    $region9: #{tpu_custom_call.1} parent=1 // pred_fallthru
      _
    // Predicated region
    $region10: #{tpu_custom_call.1} parent=1 // pred_check
      _
    $region11: #{tpu_custom_call.1} parent=1 // pred_check_branch
      %39 = sbr.rel (0) target = $region13
    $region12: #{tpu_custom_call.1} parent=1 // pred_region
      _
    $region13: #{tpu_custom_call.1} parent=1 // pred_fallthru
      _
    // Predicated region
    $region14: #{tpu_custom_call.1} parent=1 // pred_check
      _
    $region15: #{tpu_custom_call.1} parent=1 // pred_check_branch
      %41 = sbr.rel (0) target = $region17
    $region16: #{tpu_custom_call.1} parent=1 // pred_region
      %s43 = ssub.s32 5120, 5120
      %44 = vsyncadd [#allocation6], %s43
      %s45 = sshll.u32 [#allocation7], 4
      %s46 = int_to_ptr.vmem [resolvable:$true] %s45
      %51 = dma.hbm_to_vmem [thread:$0]  %s3, 5120, %s46, [#allocation6], 64, 64, 4
    $region17: #{tpu_custom_call.1} parent=1 // pred_fallthru
      _
    // Predicated region
    $region18: #{tpu_custom_call.1} parent=1 // pred_check
      _
    $region19: #{tpu_custom_call.1} parent=1 // pred_check_branch
      %53 = sbr.rel (0) target = $region21
    $region20: #{tpu_custom_call.1} parent=1 // pred_region
      _
    $region21: #{tpu_custom_call.1} parent=1 // pred_fallthru
      _
    // Predicated region
    $region22: #{tpu_custom_call.1} parent=1 // pred_check
      _
    $region23: #{tpu_custom_call.1} parent=1 // pred_check_branch
      %55 = sbr.rel (0) target = $region25
    $region24: #{tpu_custom_call.1} parent=1 // pred_region
      _
    $region25: #{tpu_custom_call.1} parent=1 // pred_fallthru
      _
    // Predicated region
    $region26: #{tpu_custom_call.1} parent=1 // pred_check
      _
    $region27: #{tpu_custom_call.1} parent=1 // pred_check_branch
      %57 = sbr.rel (0) target = $region29
    $region28: #{tpu_custom_call.1} parent=1 // pred_region
      _
    $region29: #{tpu_custom_call.1} parent=1 // pred_fallthru
      _
    // Predicated region
    $region30: #{tpu_custom_call.1} parent=1 // pred_check
      _
    $region31: #{tpu_custom_call.1} parent=1 // pred_check_branch
      %59 = sbr.rel (0) target = $region33
    $region32: #{tpu_custom_call.1} parent=1 // pred_region
      %60 = dma.done [#allocation4], 64
    $region33: #{tpu_custom_call.1} parent=1 // pred_fallthru
      _
    // Predicated region
    $region34: #{tpu_custom_call.1} parent=1 // pred_check
      _
    $region35: #{tpu_custom_call.1} parent=1 // pred_check_branch
      %62 = sbr.rel (0) target = $region37
    $region36: #{tpu_custom_call.1} parent=1 // pred_region
      %63 = dma.done [#allocation6], 1024
    $region37: #{tpu_custom_call.1} parent=1 // pred_fallthru
      _
    // Predicated region
    $region38: #{tpu_custom_call.1} parent=1 // pred_check
      _
    $region39: #{tpu_custom_call.1} parent=1 // pred_check_branch
      %65 = sbr.rel (0) target = $region41
    $region40: #{tpu_custom_call.1} parent=1 // pred_region
      %66 = dma.done [#allocation6], 5120
    $region41: #{tpu_custom_call.1} parent=1 // pred_fallthru
      _
    %v68 = vld [vmem:[#allocation3] sm:$0xf]
    %v69 = vld [vmem:[#allocation5] sm:$0xf]
    %v70 = vld [vmem:[#allocation5 + $0x4] sm:$0xf]
    %v71 = vld [vmem:[#allocation5 + $0x8] sm:$0xf]
    %v72 = vld [vmem:[#allocation5 + $0xc] sm:$0xf]
    %v73 = vld [vmem:[#allocation5 + $0x10] sm:$0xf]
    %v74 = vld [vmem:[#allocation5 + $0x14] sm:$0xf]
    %v75 = vld [vmem:[#allocation5 + $0x18] sm:$0xf]
    %v76 = vld [vmem:[#allocation5 + $0x1c] sm:$0xf]
    %v77 = vld [vmem:[#allocation5 + $0x20] sm:$0xf]
    %v78 = vld [vmem:[#allocation5 + $0x24] sm:$0xf]
    %v79 = vld [vmem:[#allocation5 + $0x28] sm:$0xf]
    %v80 = vld [vmem:[#allocation5 + $0x2c] sm:$0xf]
    %v81 = vld [vmem:[#allocation5 + $0x30] sm:$0xf]
    %v82 = vld [vmem:[#allocation5 + $0x34] sm:$0xf]
    %v83 = vld [vmem:[#allocation5 + $0x38] sm:$0xf]
    %v84 = vld [vmem:[#allocation5 + $0x3c] sm:$0xf]
    %v85 = vld [vmem:[%s2] sm:$0x1]
    %v87 = vlaneseq
    %v88 = vshrl.u32 %v87, 7
    %v89 = vsub.s32 0, %v88
    %v90 = vrot.slane %v85, %v89
    %v108 = vunpack.c.l.b16 %v69
    %v109 = vunpack.c.l.b16 %v70
    %v110 = vunpack.c.l.b16 %v71
    %v111 = vunpack.c.l.b16 %v72
    %v112 = vunpack.c.l.b16 %v73
    %v113 = vunpack.c.l.b16 %v74
    %v114 = vunpack.c.l.b16 %v75
    %v115 = vunpack.c.l.b16 %v76
    %v116 = vunpack.c.l.b16 %v77
    %v117 = vunpack.c.l.b16 %v78
    %v118 = vunpack.c.l.b16 %v79
    %v119 = vunpack.c.l.b16 %v80
    %v120 = vunpack.c.l.b16 %v81
    %v121 = vunpack.c.l.b16 %v82
    %v122 = vunpack.c.l.b16 %v83
    %v123 = vunpack.c.l.b16 %v84
    %v124 = vpack.c.b16 %v109, %v108
    %v125 = vpack.c.b16 %v111, %v110
    %v126 = vpack.c.b16 %v113, %v112
    %v127 = vpack.c.b16 %v115, %v114
    %v128 = vpack.c.b16 %v117, %v116
    %v129 = vpack.c.b16 %v119, %v118
    %v130 = vpack.c.b16 %v121, %v120
    %v131 = vpack.c.b16 %v123, %v122
    %140 = vmatprep.subr.bf16.mxu0 0
    %141 = vmatpush1.bf16.msra.mxu0 %v131
    %142 = vmatprep.subr.bf16.mxu0 0
    %143 = vmatpush1.bf16.msra.mxu0 %v130
    %144 = vmatprep.subr.bf16.mxu0 0
    %145 = vmatpush1.bf16.msra.mxu0 %v129
    %146 = vmatprep.subr.bf16.mxu0 0
    %147 = vmatpush1.bf16.msra.mxu0 %v128
    %148 = vmatprep.subr.bf16.mxu0 0
    %149 = vmatpush1.bf16.msra.mxu0 %v127
    %150 = vmatprep.subr.bf16.mxu0 0
    %151 = vmatpush1.bf16.msra.mxu0 %v126
    %152 = vmatprep.subr.bf16.mxu0 0
    %153 = vmatpush1.bf16.msra.mxu0 %v125
    %154 = vmatprep.subr.bf16.mxu0 0
    %155 = vmatpush1.bf16.msra.mxu0 %v124
    %156 = vmatprep.subr.bf16.mxu0 0
    %157 = vmatpush2.bf16.msra.mxu0 0
    %158 = vmatprep.subr.bf16.mxu0 0
    %159 = vmatpush2.bf16.msra.mxu0 0
    %160 = vmatprep.subr.bf16.mxu0 0
    %161 = vmatpush2.bf16.msra.mxu0 0
    %162 = vmatprep.subr.bf16.mxu0 0
    %163 = vmatpush2.bf16.msra.mxu0 0
    %164 = vmatprep.subr.bf16.mxu0 0
    %165 = vmatpush2.bf16.msra.mxu0 0
    %166 = vmatprep.subr.bf16.mxu0 0
    %167 = vmatpush2.bf16.msra.mxu0 0
    %168 = vmatprep.subr.bf16.mxu0 0
    %169 = vmatpush2.bf16.msra.mxu0 0
    %170 = vmatprep.subr.bf16.mxu0 0
    %171 = vmatpush2.bf16.msra.mxu0 0
    %172 = vmatprep.mubr.bf16.mxu0 0
    %173 = vmatmul.mubr.bf16.gmra.mxu0 %v68
    %v174 = vpop.f32.mrf.mxu0
    %v175 = vadd.f32 %v90, %v174
    %v176 = vpop.f32.mrf.mxu0
    %v177 = vpop.f32.mrf.mxu0
    %v178 = vpop.f32.mrf.mxu0
    %179 = vdwg.mxu0
    %vm180 = vcmp.ge.f32.partialorder %v175, 0.0
    %v181 = vmul.f32 %v175, 0.2
    %v182 = vsel %vm180, %v175, %v181
    %v183 = vpack.c.bf16 %v182, %v182
    %v184 = vld [vmem:[#allocation7] sm:$0xf]
    %v185 = vld [vmem:[#allocation7 + $0x4] sm:$0xf]
    %v186 = vld [vmem:[#allocation7 + $0x8] sm:$0xf]
    %v187 = vld [vmem:[#allocation7 + $0xc] sm:$0xf]
    %v188 = vld [vmem:[#allocation7 + $0x10] sm:$0xf]
    %v189 = vld [vmem:[#allocation7 + $0x14] sm:$0xf]
    %v190 = vld [vmem:[#allocation7 + $0x18] sm:$0xf]
    %v191 = vld [vmem:[#allocation7 + $0x1c] sm:$0xf]
    %v192 = vld [vmem:[#allocation7 + $0x20] sm:$0xf]
    %v193 = vld [vmem:[#allocation7 + $0x24] sm:$0xf]
    %v194 = vld [vmem:[#allocation7 + $0x28] sm:$0xf]
    %v195 = vld [vmem:[#allocation7 + $0x2c] sm:$0xf]
    %v196 = vld [vmem:[#allocation7 + $0x30] sm:$0xf]
    %v197 = vld [vmem:[#allocation7 + $0x34] sm:$0xf]
    %v198 = vld [vmem:[#allocation7 + $0x38] sm:$0xf]
    %v199 = vld [vmem:[#allocation7 + $0x3c] sm:$0xf]
    %v200 = vld [vmem:[%s4] sm:$0x1]
    %v202 = vlaneseq
    %v203 = vshrl.u32 %v202, 7
    %v204 = vsub.s32 0, %v203
    %v205 = vrot.slane %v200, %v204
    %v223 = vunpack.c.l.b16 %v184
    %v224 = vunpack.c.l.b16 %v185
    %v225 = vunpack.c.l.b16 %v186
    %v226 = vunpack.c.l.b16 %v187
    %v227 = vunpack.c.l.b16 %v188
    %v228 = vunpack.c.l.b16 %v189
    %v229 = vunpack.c.l.b16 %v190
    %v230 = vunpack.c.l.b16 %v191
    %v231 = vunpack.c.l.b16 %v192
    %v232 = vunpack.c.l.b16 %v193
    %v233 = vunpack.c.l.b16 %v194
    %v234 = vunpack.c.l.b16 %v195
    %v235 = vunpack.c.l.b16 %v196
    %v236 = vunpack.c.l.b16 %v197
    %v237 = vunpack.c.l.b16 %v198
    %v238 = vunpack.c.l.b16 %v199
    %v239 = vpack.c.b16 %v224, %v223
    %v240 = vpack.c.b16 %v226, %v225
    %v241 = vpack.c.b16 %v228, %v227
    %v242 = vpack.c.b16 %v230, %v229
    %v243 = vpack.c.b16 %v232, %v231
    %v244 = vpack.c.b16 %v234, %v233
    %v245 = vpack.c.b16 %v236, %v235
    %v246 = vpack.c.b16 %v238, %v237
    %255 = vmatprep.subr.bf16.mxu0 0
    %256 = vmatpush1.bf16.msra.mxu0 %v246
    %257 = vmatprep.subr.bf16.mxu0 0
    %258 = vmatpush1.bf16.msra.mxu0 %v245
    %259 = vmatprep.subr.bf16.mxu0 0
    %260 = vmatpush1.bf16.msra.mxu0 %v244
    %261 = vmatprep.subr.bf16.mxu0 0
    %262 = vmatpush1.bf16.msra.mxu0 %v243
    %263 = vmatprep.subr.bf16.mxu0 0
    %264 = vmatpush1.bf16.msra.mxu0 %v242
    %265 = vmatprep.subr.bf16.mxu0 0
    %266 = vmatpush1.bf16.msra.mxu0 %v241
    %267 = vmatprep.subr.bf16.mxu0 0
    %268 = vmatpush1.bf16.msra.mxu0 %v240
    %269 = vmatprep.subr.bf16.mxu0 0
    %270 = vmatpush1.bf16.msra.mxu0 %v239
    %271 = vmatprep.subr.bf16.mxu0 0
    %272 = vmatpush2.bf16.msra.mxu0 0
    %273 = vmatprep.subr.bf16.mxu0 0
    %274 = vmatpush2.bf16.msra.mxu0 0
    %275 = vmatprep.subr.bf16.mxu0 0
    %276 = vmatpush2.bf16.msra.mxu0 0
    %277 = vmatprep.subr.bf16.mxu0 0
    %278 = vmatpush2.bf16.msra.mxu0 0
    %279 = vmatprep.subr.bf16.mxu0 0
    %280 = vmatpush2.bf16.msra.mxu0 0
    %281 = vmatprep.subr.bf16.mxu0 0
    %282 = vmatpush2.bf16.msra.mxu0 0
    %283 = vmatprep.subr.bf16.mxu0 0
    %284 = vmatpush2.bf16.msra.mxu0 0
    %285 = vmatprep.subr.bf16.mxu0 0
    %286 = vmatpush2.bf16.msra.mxu0 0
    %287 = vmatprep.mubr.bf16.mxu0 0
    %288 = vmatmul.mubr.bf16.gmra.mxu0 %v183
    %v289 = vpop.f32.mrf.mxu0
    %v290 = vadd.f32 %v205, %v289
    %v291 = vpop.f32.mrf.mxu0
    %v292 = vpop.f32.mrf.mxu0
    %v293 = vpop.f32.mrf.mxu0
    %294 = vdwg.mxu0
    %vm295 = vcmp.ge.f32.partialorder %v290, 0.0
    %v296 = vmul.f32 %v290, 0.2
    %v297 = vsel %vm295, %v290, %v296
    %v298 = vpack.c.bf16 %v297, %v297
    %s299 = scalar_lea.vmem [#allocation7], 64
    %v300 = vld [vmem:[%s299] sm:$0xf]
    %v301 = vld [vmem:[%s299 + $0x4] sm:$0xf]
    %v302 = vld [vmem:[%s299 + $0x8] sm:$0xf]
    %v303 = vld [vmem:[%s299 + $0xc] sm:$0xf]
    %v304 = vld [vmem:[%s299 + $0x10] sm:$0xf]
    %v305 = vld [vmem:[%s299 + $0x14] sm:$0xf]
    %v306 = vld [vmem:[%s299 + $0x18] sm:$0xf]
    %v307 = vld [vmem:[%s299 + $0x1c] sm:$0xf]
    %v308 = vld [vmem:[%s299 + $0x20] sm:$0xf]
    %v309 = vld [vmem:[%s299 + $0x24] sm:$0xf]
    %v310 = vld [vmem:[%s299 + $0x28] sm:$0xf]
    %v311 = vld [vmem:[%s299 + $0x2c] sm:$0xf]
    %v312 = vld [vmem:[%s299 + $0x30] sm:$0xf]
    %v313 = vld [vmem:[%s299 + $0x34] sm:$0xf]
    %v314 = vld [vmem:[%s299 + $0x38] sm:$0xf]
    %v315 = vld [vmem:[%s299 + $0x3c] sm:$0xf]
    %s316 = scalar_lea.vmem %s4, 1
    %v317 = vld [vmem:[%s316] sm:$0x1]
    %v319 = vlaneseq
    %v320 = vshrl.u32 %v319, 7
    %v321 = vsub.s32 0, %v320
    %v322 = vrot.slane %v317, %v321
    %v340 = vunpack.c.l.b16 %v300
    %v341 = vunpack.c.l.b16 %v301
    %v342 = vunpack.c.l.b16 %v302
    %v343 = vunpack.c.l.b16 %v303
    %v344 = vunpack.c.l.b16 %v304
    %v345 = vunpack.c.l.b16 %v305
    %v346 = vunpack.c.l.b16 %v306
    %v347 = vunpack.c.l.b16 %v307
    %v348 = vunpack.c.l.b16 %v308
    %v349 = vunpack.c.l.b16 %v309
    %v350 = vunpack.c.l.b16 %v310
    %v351 = vunpack.c.l.b16 %v311
    %v352 = vunpack.c.l.b16 %v312
    %v353 = vunpack.c.l.b16 %v313
    %v354 = vunpack.c.l.b16 %v314
    %v355 = vunpack.c.l.b16 %v315
    %v356 = vpack.c.b16 %v341, %v340
    %v357 = vpack.c.b16 %v343, %v342
    %v358 = vpack.c.b16 %v345, %v344
    %v359 = vpack.c.b16 %v347, %v346
    %v360 = vpack.c.b16 %v349, %v348
    %v361 = vpack.c.b16 %v351, %v350
    %v362 = vpack.c.b16 %v353, %v352
    %v363 = vpack.c.b16 %v355, %v354
    %372 = vmatprep.subr.bf16.mxu0 0
    %373 = vmatpush1.bf16.msra.mxu0 %v363
    %374 = vmatprep.subr.bf16.mxu0 0
    %375 = vmatpush1.bf16.msra.mxu0 %v362
    %376 = vmatprep.subr.bf16.mxu0 0
    %377 = vmatpush1.bf16.msra.mxu0 %v361
    %378 = vmatprep.subr.bf16.mxu0 0
    %379 = vmatpush1.bf16.msra.mxu0 %v360
    %380 = vmatprep.subr.bf16.mxu0 0
    %381 = vmatpush1.bf16.msra.mxu0 %v359
    %382 = vmatprep.subr.bf16.mxu0 0
    %383 = vmatpush1.bf16.msra.mxu0 %v358
    %384 = vmatprep.subr.bf16.mxu0 0
    %385 = vmatpush1.bf16.msra.mxu0 %v357
    %386 = vmatprep.subr.bf16.mxu0 0
    %387 = vmatpush1.bf16.msra.mxu0 %v356
    %388 = vmatprep.subr.bf16.mxu0 0
    %389 = vmatpush2.bf16.msra.mxu0 0
    %390 = vmatprep.subr.bf16.mxu0 0
    %391 = vmatpush2.bf16.msra.mxu0 0
    %392 = vmatprep.subr.bf16.mxu0 0
    %393 = vmatpush2.bf16.msra.mxu0 0
    %394 = vmatprep.subr.bf16.mxu0 0
    %395 = vmatpush2.bf16.msra.mxu0 0
    %396 = vmatprep.subr.bf16.mxu0 0
    %397 = vmatpush2.bf16.msra.mxu0 0
    %398 = vmatprep.subr.bf16.mxu0 0
    %399 = vmatpush2.bf16.msra.mxu0 0
    %400 = vmatprep.subr.bf16.mxu0 0
    %401 = vmatpush2.bf16.msra.mxu0 0
    %402 = vmatprep.subr.bf16.mxu0 0
    %403 = vmatpush2.bf16.msra.mxu0 0
    %404 = vmatprep.mubr.bf16.mxu0 0
    %405 = vmatmul.mubr.bf16.gmra.mxu0 %v298
    %v406 = vpop.f32.mrf.mxu0
    %v407 = vadd.f32 %v322, %v406
    %v408 = vpop.f32.mrf.mxu0
    %v409 = vpop.f32.mrf.mxu0
    %v410 = vpop.f32.mrf.mxu0
    %411 = vdwg.mxu0
    %vm412 = vcmp.ge.f32.partialorder %v407, 0.0
    %v413 = vmul.f32 %v407, 0.2
    %v414 = vsel %vm412, %v407, %v413
    %v415 = vpack.c.bf16 %v414, %v414
    %s416 = scalar_lea.vmem [#allocation7], 128
    %v417 = vld [vmem:[%s416] sm:$0xf]
    %v418 = vld [vmem:[%s416 + $0x4] sm:$0xf]
    %v419 = vld [vmem:[%s416 + $0x8] sm:$0xf]
    %v420 = vld [vmem:[%s416 + $0xc] sm:$0xf]
    %v421 = vld [vmem:[%s416 + $0x10] sm:$0xf]
    %v422 = vld [vmem:[%s416 + $0x14] sm:$0xf]
    %v423 = vld [vmem:[%s416 + $0x18] sm:$0xf]
    %v424 = vld [vmem:[%s416 + $0x1c] sm:$0xf]
    %v425 = vld [vmem:[%s416 + $0x20] sm:$0xf]
    %v426 = vld [vmem:[%s416 + $0x24] sm:$0xf]
    %v427 = vld [vmem:[%s416 + $0x28] sm:$0xf]
    %v428 = vld [vmem:[%s416 + $0x2c] sm:$0xf]
    %v429 = vld [vmem:[%s416 + $0x30] sm:$0xf]
    %v430 = vld [vmem:[%s416 + $0x34] sm:$0xf]
    %v431 = vld [vmem:[%s416 + $0x38] sm:$0xf]
    %v432 = vld [vmem:[%s416 + $0x3c] sm:$0xf]
    %s433 = scalar_lea.vmem %s4, 2
    %v434 = vld [vmem:[%s433] sm:$0x1]
    %v436 = vlaneseq
    %v437 = vshrl.u32 %v436, 7
    %v438 = vsub.s32 0, %v437
    %v439 = vrot.slane %v434, %v438
    %v457 = vunpack.c.l.b16 %v417
    %v458 = vunpack.c.l.b16 %v418
    %v459 = vunpack.c.l.b16 %v419
    %v460 = vunpack.c.l.b16 %v420
    %v461 = vunpack.c.l.b16 %v421
    %v462 = vunpack.c.l.b16 %v422
    %v463 = vunpack.c.l.b16 %v423
    %v464 = vunpack.c.l.b16 %v424
    %v465 = vunpack.c.l.b16 %v425
    %v466 = vunpack.c.l.b16 %v426
    %v467 = vunpack.c.l.b16 %v427
    %v468 = vunpack.c.l.b16 %v428
    %v469 = vunpack.c.l.b16 %v429
    %v470 = vunpack.c.l.b16 %v430
    %v471 = vunpack.c.l.b16 %v431
    %v472 = vunpack.c.l.b16 %v432
    %v473 = vpack.c.b16 %v458, %v457
    %v474 = vpack.c.b16 %v460, %v459
    %v475 = vpack.c.b16 %v462, %v461
    %v476 = vpack.c.b16 %v464, %v463
    %v477 = vpack.c.b16 %v466, %v465
    %v478 = vpack.c.b16 %v468, %v467
    %v479 = vpack.c.b16 %v470, %v469
    %v480 = vpack.c.b16 %v472, %v471
    %489 = vmatprep.subr.bf16.mxu0 0
    %490 = vmatpush1.bf16.msra.mxu0 %v480
    %491 = vmatprep.subr.bf16.mxu0 0
    %492 = vmatpush1.bf16.msra.mxu0 %v479
    %493 = vmatprep.subr.bf16.mxu0 0
    %494 = vmatpush1.bf16.msra.mxu0 %v478
    %495 = vmatprep.subr.bf16.mxu0 0
    %496 = vmatpush1.bf16.msra.mxu0 %v477
    %497 = vmatprep.subr.bf16.mxu0 0
    %498 = vmatpush1.bf16.msra.mxu0 %v476
    %499 = vmatprep.subr.bf16.mxu0 0
    %500 = vmatpush1.bf16.msra.mxu0 %v475
    %501 = vmatprep.subr.bf16.mxu0 0
    %502 = vmatpush1.bf16.msra.mxu0 %v474
    %503 = vmatprep.subr.bf16.mxu0 0
    %504 = vmatpush1.bf16.msra.mxu0 %v473
    %505 = vmatprep.subr.bf16.mxu0 0
    %506 = vmatpush2.bf16.msra.mxu0 0
    %507 = vmatprep.subr.bf16.mxu0 0
    %508 = vmatpush2.bf16.msra.mxu0 0
    %509 = vmatprep.subr.bf16.mxu0 0
    %510 = vmatpush2.bf16.msra.mxu0 0
    %511 = vmatprep.subr.bf16.mxu0 0
    %512 = vmatpush2.bf16.msra.mxu0 0
    %513 = vmatprep.subr.bf16.mxu0 0
    %514 = vmatpush2.bf16.msra.mxu0 0
    %515 = vmatprep.subr.bf16.mxu0 0
    %516 = vmatpush2.bf16.msra.mxu0 0
    %517 = vmatprep.subr.bf16.mxu0 0
    %518 = vmatpush2.bf16.msra.mxu0 0
    %519 = vmatprep.subr.bf16.mxu0 0
    %520 = vmatpush2.bf16.msra.mxu0 0
    %521 = vmatprep.mubr.bf16.mxu0 0
    %522 = vmatmul.mubr.bf16.gmra.mxu0 %v415
    %v523 = vpop.f32.mrf.mxu0
    %v524 = vadd.f32 %v439, %v523
    %v525 = vpop.f32.mrf.mxu0
    %v526 = vpop.f32.mrf.mxu0
    %v527 = vpop.f32.mrf.mxu0
    %528 = vdwg.mxu0
    %vm529 = vcmp.ge.f32.partialorder %v524, 0.0
    %v530 = vmul.f32 %v524, 0.2
    %v531 = vsel %vm529, %v524, %v530
    %v532 = vpack.c.bf16 %v531, %v531
    %s533 = scalar_lea.vmem [#allocation7], 192
    %v534 = vld [vmem:[%s533] sm:$0xf]
    %v535 = vld [vmem:[%s533 + $0x4] sm:$0xf]
    %v536 = vld [vmem:[%s533 + $0x8] sm:$0xf]
    %v537 = vld [vmem:[%s533 + $0xc] sm:$0xf]
    %v538 = vld [vmem:[%s533 + $0x10] sm:$0xf]
    %v539 = vld [vmem:[%s533 + $0x14] sm:$0xf]
    %v540 = vld [vmem:[%s533 + $0x18] sm:$0xf]
    %v541 = vld [vmem:[%s533 + $0x1c] sm:$0xf]
    %v542 = vld [vmem:[%s533 + $0x20] sm:$0xf]
    %v543 = vld [vmem:[%s533 + $0x24] sm:$0xf]
    %v544 = vld [vmem:[%s533 + $0x28] sm:$0xf]
    %v545 = vld [vmem:[%s533 + $0x2c] sm:$0xf]
    %v546 = vld [vmem:[%s533 + $0x30] sm:$0xf]
    %v547 = vld [vmem:[%s533 + $0x34] sm:$0xf]
    %v548 = vld [vmem:[%s533 + $0x38] sm:$0xf]
    %v549 = vld [vmem:[%s533 + $0x3c] sm:$0xf]
    %s550 = scalar_lea.vmem %s4, 3
    %v551 = vld [vmem:[%s550] sm:$0x1]
    %v553 = vlaneseq
    %v554 = vshrl.u32 %v553, 7
    %v555 = vsub.s32 0, %v554
    %v556 = vrot.slane %v551, %v555
    %v574 = vunpack.c.l.b16 %v534
    %v575 = vunpack.c.l.b16 %v535
    %v576 = vunpack.c.l.b16 %v536
    %v577 = vunpack.c.l.b16 %v537
    %v578 = vunpack.c.l.b16 %v538
    %v579 = vunpack.c.l.b16 %v539
    %v580 = vunpack.c.l.b16 %v540
    %v581 = vunpack.c.l.b16 %v541
    %v582 = vunpack.c.l.b16 %v542
    %v583 = vunpack.c.l.b16 %v543
    %v584 = vunpack.c.l.b16 %v544
    %v585 = vunpack.c.l.b16 %v545
    %v586 = vunpack.c.l.b16 %v546
    %v587 = vunpack.c.l.b16 %v547
    %v588 = vunpack.c.l.b16 %v548
    %v589 = vunpack.c.l.b16 %v549
    %v590 = vpack.c.b16 %v575, %v574
    %v591 = vpack.c.b16 %v577, %v576
    %v592 = vpack.c.b16 %v579, %v578
    %v593 = vpack.c.b16 %v581, %v580
    %v594 = vpack.c.b16 %v583, %v582
    %v595 = vpack.c.b16 %v585, %v584
    %v596 = vpack.c.b16 %v587, %v586
    %v597 = vpack.c.b16 %v589, %v588
    %606 = vmatprep.subr.bf16.mxu0 0
    %607 = vmatpush1.bf16.msra.mxu0 %v597
    %608 = vmatprep.subr.bf16.mxu0 0
    %609 = vmatpush1.bf16.msra.mxu0 %v596
    %610 = vmatprep.subr.bf16.mxu0 0
    %611 = vmatpush1.bf16.msra.mxu0 %v595
    %612 = vmatprep.subr.bf16.mxu0 0
    %613 = vmatpush1.bf16.msra.mxu0 %v594
    %614 = vmatprep.subr.bf16.mxu0 0
    %615 = vmatpush1.bf16.msra.mxu0 %v593
    %616 = vmatprep.subr.bf16.mxu0 0
    %617 = vmatpush1.bf16.msra.mxu0 %v592
    %618 = vmatprep.subr.bf16.mxu0 0
    %619 = vmatpush1.bf16.msra.mxu0 %v591
    %620 = vmatprep.subr.bf16.mxu0 0
    %621 = vmatpush1.bf16.msra.mxu0 %v590
    %622 = vmatprep.subr.bf16.mxu0 0
    %623 = vmatpush2.bf16.msra.mxu0 0
    %624 = vmatprep.subr.bf16.mxu0 0
    %625 = vmatpush2.bf16.msra.mxu0 0
    %626 = vmatprep.subr.bf16.mxu0 0
    %627 = vmatpush2.bf16.msra.mxu0 0
    %628 = vmatprep.subr.bf16.mxu0 0
    %629 = vmatpush2.bf16.msra.mxu0 0
    %630 = vmatprep.subr.bf16.mxu0 0
    %631 = vmatpush2.bf16.msra.mxu0 0
    %632 = vmatprep.subr.bf16.mxu0 0
    %633 = vmatpush2.bf16.msra.mxu0 0
    %634 = vmatprep.subr.bf16.mxu0 0
    %635 = vmatpush2.bf16.msra.mxu0 0
    %636 = vmatprep.subr.bf16.mxu0 0
    %637 = vmatpush2.bf16.msra.mxu0 0
    %638 = vmatprep.mubr.bf16.mxu0 0
    %639 = vmatmul.mubr.bf16.gmra.mxu0 %v532
    %v640 = vpop.f32.mrf.mxu0
    %v641 = vadd.f32 %v556, %v640
    %v642 = vpop.f32.mrf.mxu0
    %v643 = vpop.f32.mrf.mxu0
    %v644 = vpop.f32.mrf.mxu0
    %645 = vdwg.mxu0
    %vm646 = vcmp.ge.f32.partialorder %v641, 0.0
    %v647 = vmul.f32 %v641, 0.2
    %v648 = vsel %vm646, %v641, %v647
    %v649 = vpack.c.bf16 %v648, %v648
    %s650 = scalar_lea.vmem [#allocation7], 256
    %v651 = vld [vmem:[%s650] sm:$0xf]
    %v652 = vld [vmem:[%s650 + $0x4] sm:$0xf]
    %v653 = vld [vmem:[%s650 + $0x8] sm:$0xf]
    %v654 = vld [vmem:[%s650 + $0xc] sm:$0xf]
    %v655 = vld [vmem:[%s650 + $0x10] sm:$0xf]
    %v656 = vld [vmem:[%s650 + $0x14] sm:$0xf]
    %v657 = vld [vmem:[%s650 + $0x18] sm:$0xf]
    %v658 = vld [vmem:[%s650 + $0x1c] sm:$0xf]
    %v659 = vld [vmem:[%s650 + $0x20] sm:$0xf]
    %v660 = vld [vmem:[%s650 + $0x24] sm:$0xf]
    %v661 = vld [vmem:[%s650 + $0x28] sm:$0xf]
    %v662 = vld [vmem:[%s650 + $0x2c] sm:$0xf]
    %v663 = vld [vmem:[%s650 + $0x30] sm:$0xf]
    %v664 = vld [vmem:[%s650 + $0x34] sm:$0xf]
    %v665 = vld [vmem:[%s650 + $0x38] sm:$0xf]
    %v666 = vld [vmem:[%s650 + $0x3c] sm:$0xf]
    %s667 = scalar_lea.vmem %s4, 4
    %v668 = vld [vmem:[%s667] sm:$0x1]
    %v670 = vlaneseq
    %v671 = vshrl.u32 %v670, 7
    %v672 = vsub.s32 0, %v671
    %v673 = vrot.slane %v668, %v672
    %v691 = vunpack.c.l.b16 %v651
    %v692 = vunpack.c.l.b16 %v652
    %v693 = vunpack.c.l.b16 %v653
    %v694 = vunpack.c.l.b16 %v654
    %v695 = vunpack.c.l.b16 %v655
    %v696 = vunpack.c.l.b16 %v656
    %v697 = vunpack.c.l.b16 %v657
    %v698 = vunpack.c.l.b16 %v658
    %v699 = vunpack.c.l.b16 %v659
    %v700 = vunpack.c.l.b16 %v660
    %v701 = vunpack.c.l.b16 %v661
    %v702 = vunpack.c.l.b16 %v662
    %v703 = vunpack.c.l.b16 %v663
    %v704 = vunpack.c.l.b16 %v664
    %v705 = vunpack.c.l.b16 %v665
    %v706 = vunpack.c.l.b16 %v666
    %v707 = vpack.c.b16 %v692, %v691
    %v708 = vpack.c.b16 %v694, %v693
    %v709 = vpack.c.b16 %v696, %v695
    %v710 = vpack.c.b16 %v698, %v697
    %v711 = vpack.c.b16 %v700, %v699
    %v712 = vpack.c.b16 %v702, %v701
    %v713 = vpack.c.b16 %v704, %v703
    %v714 = vpack.c.b16 %v706, %v705
    %723 = vmatprep.subr.bf16.mxu0 0
    %724 = vmatpush1.bf16.msra.mxu0 %v714
    %725 = vmatprep.subr.bf16.mxu0 0
    %726 = vmatpush1.bf16.msra.mxu0 %v713
    %727 = vmatprep.subr.bf16.mxu0 0
    %728 = vmatpush1.bf16.msra.mxu0 %v712
    %729 = vmatprep.subr.bf16.mxu0 0
    %730 = vmatpush1.bf16.msra.mxu0 %v711
    %731 = vmatprep.subr.bf16.mxu0 0
    %732 = vmatpush1.bf16.msra.mxu0 %v710
    %733 = vmatprep.subr.bf16.mxu0 0
    %734 = vmatpush1.bf16.msra.mxu0 %v709
    %735 = vmatprep.subr.bf16.mxu0 0
    %736 = vmatpush1.bf16.msra.mxu0 %v708
    %737 = vmatprep.subr.bf16.mxu0 0
    %738 = vmatpush1.bf16.msra.mxu0 %v707
    %739 = vmatprep.subr.bf16.mxu0 0
    %740 = vmatpush2.bf16.msra.mxu0 0
    %741 = vmatprep.subr.bf16.mxu0 0
    %742 = vmatpush2.bf16.msra.mxu0 0
    %743 = vmatprep.subr.bf16.mxu0 0
    %744 = vmatpush2.bf16.msra.mxu0 0
    %745 = vmatprep.subr.bf16.mxu0 0
    %746 = vmatpush2.bf16.msra.mxu0 0
    %747 = vmatprep.subr.bf16.mxu0 0
    %748 = vmatpush2.bf16.msra.mxu0 0
    %749 = vmatprep.subr.bf16.mxu0 0
    %750 = vmatpush2.bf16.msra.mxu0 0
    %751 = vmatprep.subr.bf16.mxu0 0
    %752 = vmatpush2.bf16.msra.mxu0 0
    %753 = vmatprep.subr.bf16.mxu0 0
    %754 = vmatpush2.bf16.msra.mxu0 0
    %755 = vmatprep.mubr.bf16.mxu0 0
    %756 = vmatmul.mubr.bf16.gmra.mxu0 %v649
    %v757 = vpop.f32.mrf.mxu0
    %v758 = vadd.f32 %v673, %v757
    %v759 = vpop.f32.mrf.mxu0
    %v760 = vpop.f32.mrf.mxu0
    %v761 = vpop.f32.mrf.mxu0
    %762 = vdwg.mxu0
    %vm763 = vcmp.ge.f32.partialorder %v758, 0.0
    %v764 = vmul.f32 %v758, 0.2
    %v765 = vsel %vm763, %v758, %v764
    %v766 = vld [vmem:[%s5] sm:$0x1]
    %v767 = vunpack.c.l.bf16 %v766
    %v768 = vlaneseq
    %v769 = vshrl.u32 %v768, 7
    %v770 = vsub.s32 0, %v769
    %v771 = vrot.slane %v767, %v770
    %v772 = vmul.f32 %v765, %v771
    %773 = vadd.xlane.f32.xlu0 %v772
    %v774 = vpop.xlane.xlu0 %773
    %v775 = vld [vmem:[#allocation2] sm:$0x1]
    %v777 = vlaneseq
    %v778 = vshrl.u32 %v777, 7
    %v779 = vsub.s32 0, %v778
    %v780 = vrot.slane %v775, %v779
    %v782 = vadd.f32 %v774, %v780
    %vm783 = vcmask 7168
    %784 = vst.msk [vmem:[%s7] sm:$0xff] %vm783, %v782
    // Predicated region
    $region42: #{tpu_custom_call.1} parent=1 // pred_check
      _
    $region43: #{tpu_custom_call.1} parent=1 // pred_check_branch
      %786 = sbr.rel (0) target = $region45
    $region44: #{tpu_custom_call.1} parent=1 // pred_region
      _
    $region45: #{tpu_custom_call.1} parent=1 // pred_fallthru
      _
    // Predicated region
    $region46: #{tpu_custom_call.1} parent=1 // pred_check
      _
    $region47: #{tpu_custom_call.1} parent=1 // pred_check_branch
      %788 = sbr.rel (0) target = $region49
    $region48: #{tpu_custom_call.1} parent=1 // pred_region
      _
    $region49: #{tpu_custom_call.1} parent=1 // pred_fallthru
      _
    %789 = vsyncpa [#allocation4], 1
    %790 = vsyncpa [#allocation6], 1

</llo_original>
